<compile_context>
chip_gen: v7x
topology: tpu7x:2x2x1
jax: 0.10.0
libtpu: 0.0.40
codegen_flags: <defaults>
</compile_context>

<pallas_src>
import jax
import jax.numpy as jnp
from jax.experimental import pallas as pl
from jax.experimental.pallas import tpu as pltpu

_MIB = 1024 * 1024


def _round_up(x, m):
    return ((x + m - 1) // m) * m


def _pad_cast_2d(a, shape, dtype):
    """Cast/pad a 2-D array to `shape` with zeros; skips copies when possible."""
    if a.shape == shape:
        return a if a.dtype == dtype else a.astype(dtype)
    out = jnp.zeros(shape, dtype)
    return out.at[: a.shape[0], : a.shape[1]].set(a.astype(dtype))


# ----------------------------- kernels --------------------------------------


def _ffn_resident_kernel(x_ref, w1_ref, b1_ref, w2_ref, b2_ref, o_ref):
    # Weights fully resident in VMEM; grid is row tiles only.
    # x_ref: (tm, d_pad)  w1_ref: (d_pad, f_pad)  b1_ref: (1, f_pad)
    # w2_ref: (f_pad, d_pad)  b2_ref: (1, d_pad)  o_ref: (tm, d_pad)
    w2 = w2_ref[...]
    h = jnp.dot(x_ref[...], w1_ref[...], preferred_element_type=jnp.float32)
    h = jnp.maximum(h + b1_ref[...], 0.0)  # bias + ReLU
    # Dropout == identity (eval mode).
    out = jnp.dot(h.astype(w2.dtype), w2, preferred_element_type=jnp.float32)
    o_ref[...] = (out + b2_ref[...]).astype(o_ref.dtype)


def _ffn_streamed_kernel(x_ref, w1_ref, b1_ref, w2_ref, b2_ref, o_ref, acc_ref):
    # dim_ff streamed in tiles along grid axis 1 (reduction axis, last).
    # x_ref: (tm, d_pad)  w1_ref: (d_pad, tf)  b1_ref: (1, tf)
    # w2_ref: (tf, d_pad)  b2_ref: (1, d_pad)  o_ref: (tm, d_pad)
    # acc_ref: (tm, d_pad) f32 scratch, resident across k.
    k = pl.program_id(1)

    @pl.when(k == 0)
    def _init():
        acc_ref[...] = jnp.zeros_like(acc_ref)

    w2 = w2_ref[...]
    h = jnp.dot(x_ref[...], w1_ref[...], preferred_element_type=jnp.float32)
    h = jnp.maximum(h + b1_ref[...], 0.0)  # bias + ReLU
    # Dropout == identity (eval mode).
    acc_ref[...] += jnp.dot(h.astype(w2.dtype), w2,
                            preferred_element_type=jnp.float32)

    @pl.when(k == pl.num_programs(1) - 1)
    def _finalize():
        o_ref[...] = (acc_ref[...] + b2_ref[...]).astype(o_ref.dtype)


# --------------------------- parameter prep ---------------------------------


def prepare_params(w1, b1, w2, b2, *, compute_dtype=jnp.bfloat16, tf=512):
    """One-time weight prep: cast to compute dtype, pad to lane/tile-aligned
    shapes. Padded entries are exactly zero, so ReLU(0 + 0) = 0 and padded
    dim_ff / dim_model columns contribute nothing (exact)."""
    dim_model, dim_ff = w1.shape
    assert w2.shape == (dim_ff, dim_model)
    cdt = jnp.dtype(compute_dtype)

    d_pad = _round_up(dim_model, 128)                      # lane-dense output
    tf_eff = min(_round_up(tf, 128), _round_up(dim_ff, 128))
    f_pad = _round_up(dim_ff, tf_eff)                      # dim_ff tiles divide

    w1_p = _pad_cast_2d(w1, (d_pad, f_pad), cdt)
    w2_p = _pad_cast_2d(w2, (f_pad, d_pad), cdt)
    b1_p = _pad_cast_2d(b1.reshape(1, dim_ff), (1, f_pad), jnp.float32)
    b2_p = _pad_cast_2d(b2.reshape(1, dim_model), (1, d_pad), jnp.float32)

    return dict(w1=w1_p, b1=b1_p, w2=w2_p, b2=b2_p,
                dim_model=dim_model, dim_ff=dim_ff,
                d_pad=d_pad, f_pad=f_pad, tf_eff=tf_eff,
                compute_dtype=cdt)


# ----------------------------- wrapper ---------------------------------------


def _resident_footprint(tm, d_pad, f_pad, csz, osz):
    w_bytes = 2 * d_pad * f_pad * csz
    x_bytes = tm * d_pad * csz
    out_bytes = tm * d_pad * osz
    hidden_bytes = tm * f_pad * 4
    bias_bytes = (f_pad + d_pad) * 4
    return 2 * (w_bytes + x_bytes + out_bytes + bias_bytes) + hidden_bytes


def _streamed_footprint(tm, d_pad, tf, csz, osz):
    x_bytes = tm * d_pad * csz
    w_bytes = 2 * d_pad * tf * csz
    out_bytes = tm * d_pad * osz
    acc_bytes = tm * d_pad * 4
    hidden_bytes = tm * tf * 4
    bias_bytes = (tf + d_pad) * 4
    return 2 * (x_bytes + w_bytes + out_bytes + bias_bytes) + acc_bytes + hidden_bytes


def _vmem_limit(footprint):
    # Footprint-derived limit with headroom, clamped so it is never the whole
    # physical VMEM of a v7x TensorCore nor absurdly small.
    return int(min(max(int(footprint * 1.15) + _MIB, 32 * _MIB), 110 * _MIB))


def feedforward_pallas(x, params, *, tm=512,
                       weight_resident_budget_bytes=40 * _MIB):
    """x: [N, dim_model]. params: output of prepare_params (weights already
    cast/padded — no per-call weight traffic). Matmuls run in the params'
    compute dtype with f32 accumulation; output dtype matches x.dtype."""
    n, dim_model = x.shape
    assert dim_model == params["dim_model"]
    cdt = params["compute_dtype"]
    d_pad, f_pad, tf_eff = params["d_pad"], params["f_pad"], params["tf_eff"]
    w1_p, b1_p, w2_p, b2_p = params["w1"], params["b1"], params["w2"], params["b2"]

    out_dtype = x.dtype
    csz = cdt.itemsize
    osz = jnp.dtype(out_dtype).itemsize

    # Row-tile alignment matches native packing: 8 rows (f32), 16 (bf16), 32 (8-bit).
    align = 8 if csz >= 4 else (16 if csz == 2 else 32)
    tm_eff = max(align, min(_round_up(tm, align), _round_up(n, align)))
    n_pad = _round_up(n, tm_eff)
    n_row_tiles = n_pad // tm_eff

    # x prep: skip the zeros+set round trip when already aligned.
    if n_pad == n and d_pad == dim_model:
        x_p = x if x.dtype == cdt else x.astype(cdt)
    else:
        x_p = jnp.zeros((n_pad, d_pad), cdt).at[:n, :dim_model].set(x.astype(cdt))

    flops = 4 * n_pad * d_pad * f_pad

    resident_fp = _resident_footprint(tm_eff, d_pad, f_pad, csz, osz)
    use_resident = resident_fp <= weight_resident_budget_bytes

    if use_resident:
        bytes_accessed = int(x_p.size * csz + (w1_p.size + w2_p.size) * csz
                             + (f_pad + d_pad) * 4 + n_pad * d_pad * osz)
        out_p = pl.pallas_call(
            _ffn_resident_kernel,
            out_shape=jax.ShapeDtypeStruct((n_pad, d_pad), out_dtype),
            grid_spec=pltpu.PrefetchScalarGridSpec(
                num_scalar_prefetch=0,
                grid=(n_row_tiles,),
                in_specs=[
                    pl.BlockSpec((tm_eff, d_pad), lambda i: (i, 0)),   # x rows
                    pl.BlockSpec((d_pad, f_pad), lambda i: (0, 0)),    # W1 (resident)
                    pl.BlockSpec((1, f_pad), lambda i: (0, 0)),        # b1
                    pl.BlockSpec((f_pad, d_pad), lambda i: (0, 0)),    # W2 (resident)
                    pl.BlockSpec((1, d_pad), lambda i: (0, 0)),        # b2
                ],
                out_specs=pl.BlockSpec((tm_eff, d_pad), lambda i: (i, 0)),
            ),
            compiler_params=pltpu.CompilerParams(
                dimension_semantics=("parallel",),
                vmem_limit_bytes=_vmem_limit(resident_fp)),
            cost_estimate=pl.CostEstimate(flops=flops, transcendentals=0,
                                          bytes_accessed=bytes_accessed),
        )(x_p, w1_p, b1_p, w2_p, b2_p)
    else:
        n_ff_tiles = f_pad // tf_eff
        streamed_fp = _streamed_footprint(tm_eff, d_pad, tf_eff, csz, osz)
        bytes_accessed = int(x_p.size * csz
                             + n_row_tiles * (w1_p.size + w2_p.size) * csz
                             + (f_pad + d_pad) * 4 + n_pad * d_pad * osz)
        out_p = pl.pallas_call(
            _ffn_streamed_kernel,
            out_shape=jax.ShapeDtypeStruct((n_pad, d_pad), out_dtype),
            grid_spec=pltpu.PrefetchScalarGridSpec(
                num_scalar_prefetch=0,
                grid=(n_row_tiles, n_ff_tiles),            # reduction axis last
                in_specs=[
                    pl.BlockSpec((tm_eff, d_pad), lambda i, k: (i, 0)),   # x rows
                    pl.BlockSpec((d_pad, tf_eff), lambda i, k: (0, k)),   # W1 tile
                    pl.BlockSpec((1, tf_eff), lambda i, k: (0, k)),       # b1 tile
                    pl.BlockSpec((tf_eff, d_pad), lambda i, k: (k, 0)),   # W2 tile
                    pl.BlockSpec((1, d_pad), lambda i, k: (0, 0)),        # b2
                ],
                out_specs=pl.BlockSpec((tm_eff, d_pad), lambda i, k: (i, 0)),
                scratch_shapes=[pltpu.VMEM((tm_eff, d_pad), jnp.float32)],
            ),
            compiler_params=pltpu.CompilerParams(
                dimension_semantics=("parallel", "arbitrary"),
                vmem_limit_bytes=_vmem_limit(streamed_fp)),
            cost_estimate=pl.CostEstimate(flops=flops, transcendentals=0,
                                          bytes_accessed=bytes_accessed),
        )(x_p, w1_p, b1_p, w2_p, b2_p)

    return out_p[:n, :dim_model]


# ------------------------------ test -----------------------------------------


def init_params(key, dim_model, dim_ff):
    """Deterministic init matching nn.Linear shapes (weights stored transposed)."""
    k1, k2, k3, k4 = jax.random.split(key, 4)
    lim1 = 1.0 / jnp.sqrt(dim_model)
    lim2 = 1.0 / jnp.sqrt(dim_ff)
    # nn.Linear(dim_model, dim_ff).weight has shape (dim_ff, dim_model);
    # we store its transpose so the kernel computes x @ W1 + b1.
    w1 = jax.random.uniform(k1, (dim_model, dim_ff), jnp.float32, -lim1, lim1)
    b1 = jax.random.uniform(k2, (dim_ff,), jnp.float32, -lim1, lim1)
    w2 = jax.random.uniform(k3, (dim_ff, dim_model), jnp.float32, -lim2, lim2)
    b2 = jax.random.uniform(k4, (dim_model,), jnp.float32, -lim2, lim2)
    return w1, b1, w2, b2


if __name__ == "__main__":
    batch, seq, dim_model, dim_ff = 2, 8, 32, 256
    key = jax.random.PRNGKey(0)
    kx, kp = jax.random.split(key)

    x = jax.random.normal(kx, (batch, seq, dim_model), jnp.float32)
    w1, b1, w2, b2 = init_params(kp, dim_model, dim_ff)

    # Flatten (batch, seq) -> rows for the kernel, reshape back afterwards.
    x2d = x.reshape(batch * seq, dim_model)

    # Pure-JAX reference (dropout is identity in eval mode).
    hi = jax.lax.Precision.HIGHEST
    ref = (jnp.dot(jnp.maximum(jnp.dot(x2d, w1, precision=hi) + b1, 0.0),
                   w2, precision=hi) + b2).reshape(batch, seq, dim_model)

    # 1) f32 compute, weight-resident fast path.
    params_f32 = prepare_params(w1, b1, w2, b2, compute_dtype=jnp.float32)
    out_f32 = feedforward_pallas(x2d, params_f32).reshape(batch, seq, dim_model)
    jax.block_until_ready(out_f32)
    assert out_f32.shape == (batch, seq, dim_model)
    assert jnp.allclose(out_f32, ref, atol=2e-3, rtol=2e-3), "f32 resident mismatch"

    # 2) f32 compute, forced streamed path (2 row tiles x 2 dim_ff tiles).
    params_f32_s = prepare_params(w1, b1, w2, b2, compute_dtype=jnp.float32, tf=128)
    out_str = feedforward_pallas(
        x2d, params_f32_s, tm=8, weight_resident_budget_bytes=0
    ).reshape(batch, seq, dim_model)
    jax.block_until_ready(out_str)
    assert jnp.allclose(out_str, ref, atol=2e-3, rtol=2e-3), "f32 streamed mismatch"

    # 3) Default bf16 MXU path with f32 accumulation: looser tolerance.
    params_bf16 = prepare_params(w1, b1, w2, b2)
    out_bf16 = feedforward_pallas(x2d, params_bf16).reshape(batch, seq, dim_model)
    jax.block_until_ready(out_bf16)
    assert jnp.allclose(out_bf16, ref, atol=5e-2, rtol=5e-2), "bf16 mismatch"

    print("KERNEL_OK")
</pallas_src>

<mosaic_0001>
module attributes {stable_mosaic.version = 11 : i64} {
  func.func @_ffn_resident_kernel(%arg0: i32, %arg1: memref<16x128xf32, #tpu.memory_space<vmem>>, %arg2: memref<128x256xf32, #tpu.memory_space<vmem>>, %arg3: memref<1x256xf32, #tpu.memory_space<vmem>>, %arg4: memref<256x128xf32, #tpu.memory_space<vmem>>, %arg5: memref<1x128xf32, #tpu.memory_space<vmem>>, %arg6: memref<16x128xf32, #tpu.memory_space<vmem>>) attributes {dimension_semantics = [#tpu.dimension_semantics<parallel>], iteration_bounds = array<i64: 1>, scalar_prefetch = 0 : i64, scratch_operands = 0 : i64, tpu.core_type = #tpu.core_type<tc>, window_params = [{transform_indices = @transform_0, window_bounds = array<i64: 16, 128>}, {pipeline_mode = #tpu.pipeline_mode<synchronous>, transform_indices = @transform_1, window_bounds = array<i64: 128, 256>}, {pipeline_mode = #tpu.pipeline_mode<synchronous>, transform_indices = @transform_2, window_bounds = array<i64: 1, 256>}, {pipeline_mode = #tpu.pipeline_mode<synchronous>, transform_indices = @transform_3, window_bounds = array<i64: 256, 128>}, {pipeline_mode = #tpu.pipeline_mode<synchronous>, transform_indices = @transform_4, window_bounds = array<i64: 1, 128>}, {transform_indices = @transform_5, window_bounds = array<i64: 16, 128>}]} {
    %c0 = arith.constant 0 : index
    %c0_0 = arith.constant 0 : index
    %0 = vector.load %arg4[%c0, %c0_0] : memref<256x128xf32, #tpu.memory_space<vmem>>, vector<256x128xf32>
    %c0_1 = arith.constant 0 : index
    %c0_2 = arith.constant 0 : index
    %1 = vector.load %arg1[%c0_1, %c0_2] : memref<16x128xf32, #tpu.memory_space<vmem>>, vector<16x128xf32>
    %c0_3 = arith.constant 0 : index
    %c0_4 = arith.constant 0 : index
    %2 = vector.load %arg2[%c0_3, %c0_4] : memref<128x256xf32, #tpu.memory_space<vmem>>, vector<128x256xf32>
    %cst = arith.constant dense<0.000000e+00> : vector<16x256xf32>
    %3 = tpu.matmul %1, %2, %cst {dimension_numbers = #tpu.dot_dimension_numbers<[1], [0], [0], [1], [0, 0, 1, 1], [], []>} : vector<16x128xf32>, vector<128x256xf32>, vector<16x256xf32> -> vector<16x256xf32>
    %c0_5 = arith.constant 0 : index
    %c0_6 = arith.constant 0 : index
    %4 = vector.load %arg3[%c0_5, %c0_6] : memref<1x256xf32, #tpu.memory_space<vmem>>, vector<1x256xf32>
    %5 = vector.broadcast %4 : vector<1x256xf32> to vector<16x256xf32>
    %6 = arith.addf %3, %5 : vector<16x256xf32>
    %cst_7 = arith.constant 0.000000e+00 : f32
    %7 = vector.broadcast %cst_7 : f32 to vector<16x256xf32>
    %8 = arith.maximumf %6, %7 : vector<16x256xf32>
    %cst_8 = arith.constant dense<0.000000e+00> : vector<16x128xf32>
    %9 = tpu.matmul %8, %0, %cst_8 {dimension_numbers = #tpu.dot_dimension_numbers<[1], [0], [0], [1], [0, 0, 1, 1], [], []>} : vector<16x256xf32>, vector<256x128xf32>, vector<16x128xf32> -> vector<16x128xf32>
    %c0_9 = arith.constant 0 : index
    %c0_10 = arith.constant 0 : index
    %10 = vector.load %arg5[%c0_9, %c0_10] : memref<1x128xf32, #tpu.memory_space<vmem>>, vector<1x128xf32>
    %11 = vector.broadcast %10 : vector<1x128xf32> to vector<16x128xf32>
    %12 = arith.addf %9, %11 : vector<16x128xf32>
    %c0_11 = arith.constant 0 : index
    %c0_12 = arith.constant 0 : index
    %13 = vector.load %arg6[%c0_11, %c0_12] : memref<16x128xf32, #tpu.memory_space<vmem>>, vector<16x128xf32>
    tpu.vector_store %arg6[%c0_11, %c0_12], %12 {strides = array<i32>} : memref<16x128xf32, #tpu.memory_space<vmem>>, vector<16x128xf32>,
    return
  }
  func.func @transform_0(%arg0: i32) -> (i32, i32) {
    %c0_i32 = arith.constant 0 : i32
    %c0_i32_0 = arith.constant 0 : i32
    return %arg0, %c0_i32 : i32, i32
  }
  func.func @transform_1(%arg0: i32) -> (i32, i32) {
    %c0_i32 = arith.constant 0 : i32
    %c0_i32_0 = arith.constant 0 : i32
    %c0_i32_1 = arith.constant 0 : i32
    return %c0_i32, %c0_i32_0 : i32, i32
  }
  func.func @transform_2(%arg0: i32) -> (i32, i32) {
    %c0_i32 = arith.constant 0 : i32
    %c0_i32_0 = arith.constant 0 : i32
    %c0_i32_1 = arith.constant 0 : i32
    return %c0_i32, %c0_i32_0 : i32, i32
  }
  func.func @transform_3(%arg0: i32) -> (i32, i32) {
    %c0_i32 = arith.constant 0 : i32
    %c0_i32_0 = arith.constant 0 : i32
    %c0_i32_1 = arith.constant 0 : i32
    return %c0_i32, %c0_i32_0 : i32, i32
  }
  func.func @transform_4(%arg0: i32) -> (i32, i32) {
    %c0_i32 = arith.constant 0 : i32
    %c0_i32_0 = arith.constant 0 : i32
    %c0_i32_1 = arith.constant 0 : i32
    return %c0_i32, %c0_i32_0 : i32, i32
  }
  func.func @transform_5(%arg0: i32) -> (i32, i32) {
    %c0_i32 = arith.constant 0 : i32
    %c0_i32_0 = arith.constant 0 : i32
    return %arg0, %c0_i32 : i32, i32
  }
}

</mosaic_0001>

<llo_original>
// kernel: tpu_custom_call.1
$region0: #{tpu_custom_call.1}
  #allocation0 [shape = 'u32[]', space=smem, size = 0x4, offset = 0x4, fixed_abs, tag = 'smem constant byte address 0x4 - core index']
  #allocation1 [shape = 'u32[144,128]{1,0:T(1,128)}', space=vmem, size = 0x12000, scoped, tag = 'internal scratch']
  %s0 = inlined_call_operand.hbm [shape: f32[16,128], index: 0, kind: input, shape index: {}]
  %s1 = inlined_call_operand.hbm [shape: f32[128,256], index: 1, kind: input, shape index: {}]
  %s2 = inlined_call_operand.vmem [shape: f32[1,256], index: 2, kind: input, shape index: {}]
  %s3 = inlined_call_operand.hbm [shape: f32[256,128], index: 3, kind: input, shape index: {}]
  %s4 = inlined_call_operand.vmem [shape: f32[1,128], index: 4, kind: input, shape index: {}]
  %s5 = inlined_call_operand.hbm [shape: f32[16,128], index: 5, kind: output, shape index: {}]
  %s6 = sld [smem:[#allocation0]]
  $region42: #{tpu_custom_call.1} parent=0
    _
  %s8 = ssub.s32 1, %s6
  %s9 = scalar_select 0, %s8, %s6
  $region1: #{tpu_custom_call.1} parent=0
    #allocation2 [shape = 'u8[8192]{0}', space=vmem, size = 0x2000, scoped, tag = 'input window, operand 0, single buffered']
    #allocation3 [shape = 's32[1]{0}', space=sflag, size = 0x4, scoped, tag = 'scoped memory for tpu_custom_call.1']
    #allocation4 [shape = 's32[1]{0}', space=sflag, size = 0x4, scoped, tag = 'scoped memory for tpu_custom_call.1']
    #allocation5 [shape = 'u8[131072]{0}', space=vmem, size = 0x20000, scoped, tag = 'input window, operand 1, single buffered']
    #allocation6 [shape = 's32[1]{0}', space=sflag, size = 0x4, scoped, tag = 'scoped memory for tpu_custom_call.1']
    #allocation7 [shape = 'u8[131072]{0}', space=vmem, size = 0x20000, scoped, tag = 'input window, operand 3, single buffered']
    #allocation8 [shape = 'u8[8192]{0}', space=vmem, size = 0x2000, scoped, tag = 'output window, operand 0, single buffered']
    %10 = vsyncpa [#allocation3], 0
    %11 = vsyncpa [#allocation6], 0
    %12 = vsyncpa [#allocation4], 0
    // Predicated region
    $region2: #{tpu_custom_call.1} parent=1 // pred_check
      _
    $region3: #{tpu_custom_call.1} parent=1 // pred_check_branch
      %14 = sbr.rel (0) target = $region5
    $region4: #{tpu_custom_call.1} parent=1 // pred_region
      %s16 = ssub.s32 256, 256
      %17 = vsyncadd [#allocation3], %s16
      %s18 = sshll.u32 [#allocation2], 4
      %s19 = int_to_ptr.vmem [resolvable:$true] %s18
      %24 = dma.hbm_to_vmem [thread:$0]  %s0, 256, %s19, [#allocation3], 128, 128, 8
    $region5: #{tpu_custom_call.1} parent=1 // pred_fallthru
      _
    // Predicated region
    $region6: #{tpu_custom_call.1} parent=1 // pred_check
      _
    $region7: #{tpu_custom_call.1} parent=1 // pred_check_branch
      %26 = sbr.rel (0) target = $region9
    $region8: #{tpu_custom_call.1} parent=1 // pred_region
      %s28 = ssub.s32 4096, 4096
      %29 = vsyncadd [#allocation6], %s28
      %s30 = sshll.u32 [#allocation5], 4
      %s31 = int_to_ptr.vmem [resolvable:$true] %s30
      %36 = dma.hbm_to_vmem [thread:$0]  %s1, 4096, %s31, [#allocation6], 256, 256, 16
    $region9: #{tpu_custom_call.1} parent=1 // pred_fallthru
      _
    // Predicated region
    $region10: #{tpu_custom_call.1} parent=1 // pred_check
      _
    $region11: #{tpu_custom_call.1} parent=1 // pred_check_branch
      %38 = sbr.rel (0) target = $region13
    $region12: #{tpu_custom_call.1} parent=1 // pred_region
      _
    $region13: #{tpu_custom_call.1} parent=1 // pred_fallthru
      _
    // Predicated region
    $region14: #{tpu_custom_call.1} parent=1 // pred_check
      _
    $region15: #{tpu_custom_call.1} parent=1 // pred_check_branch
      %40 = sbr.rel (0) target = $region17
    $region16: #{tpu_custom_call.1} parent=1 // pred_region
      %s42 = ssub.s32 4096, 4096
      %43 = vsyncadd [#allocation6], %s42
      %s44 = sshll.u32 [#allocation7], 4
      %s45 = int_to_ptr.vmem [resolvable:$true] %s44
      %50 = dma.hbm_to_vmem [thread:$0]  %s3, 4096, %s45, [#allocation6], 128, 128, 8
    $region17: #{tpu_custom_call.1} parent=1 // pred_fallthru
      _
    // Predicated region
    $region18: #{tpu_custom_call.1} parent=1 // pred_check
      _
    $region19: #{tpu_custom_call.1} parent=1 // pred_check_branch
      %52 = sbr.rel (0) target = $region21
    $region20: #{tpu_custom_call.1} parent=1 // pred_region
      _
    $region21: #{tpu_custom_call.1} parent=1 // pred_fallthru
      _
    // Predicated region
    $region22: #{tpu_custom_call.1} parent=1 // pred_check
      _
    $region23: #{tpu_custom_call.1} parent=1 // pred_check_branch
      %54 = sbr.rel (0) target = $region25
    $region24: #{tpu_custom_call.1} parent=1 // pred_region
      %55 = dma.done [#allocation3], 256
    $region25: #{tpu_custom_call.1} parent=1 // pred_fallthru
      _
    // Predicated region
    $region26: #{tpu_custom_call.1} parent=1 // pred_check
      _
    $region27: #{tpu_custom_call.1} parent=1 // pred_check_branch
      %57 = sbr.rel (0) target = $region29
    $region28: #{tpu_custom_call.1} parent=1 // pred_region
      %58 = dma.done [#allocation6], 4096
    $region29: #{tpu_custom_call.1} parent=1 // pred_fallthru
      _
    // Predicated region
    $region30: #{tpu_custom_call.1} parent=1 // pred_check
      _
    $region31: #{tpu_custom_call.1} parent=1 // pred_check_branch
      %60 = sbr.rel (0) target = $region33
    $region32: #{tpu_custom_call.1} parent=1 // pred_region
      %61 = dma.done [#allocation6], 4096
    $region33: #{tpu_custom_call.1} parent=1 // pred_fallthru
      _
    %v62 = vld [vmem:[#allocation7] sm:$0xff]
    %v63 = vld [vmem:[#allocation7 + $0x8] sm:$0xff]
    %v64 = vld [vmem:[#allocation7 + $0x10] sm:$0xff]
    %v65 = vld [vmem:[#allocation7 + $0x18] sm:$0xff]
    %v66 = vld [vmem:[#allocation7 + $0x20] sm:$0xff]
    %v67 = vld [vmem:[#allocation7 + $0x28] sm:$0xff]
    %v68 = vld [vmem:[#allocation7 + $0x30] sm:$0xff]
    %v69 = vld [vmem:[#allocation7 + $0x38] sm:$0xff]
    %v70 = vld [vmem:[#allocation7 + $0x40] sm:$0xff]
    %v71 = vld [vmem:[#allocation7 + $0x48] sm:$0xff]
    %v72 = vld [vmem:[#allocation7 + $0x50] sm:$0xff]
    %v73 = vld [vmem:[#allocation7 + $0x58] sm:$0xff]
    %v74 = vld [vmem:[#allocation7 + $0x60] sm:$0xff]
    %v75 = vld [vmem:[#allocation7 + $0x68] sm:$0xff]
    %v76 = vld [vmem:[#allocation7 + $0x70] sm:$0xff]
    %v77 = vld [vmem:[#allocation7 + $0x78] sm:$0xff]
    %v78 = vld [vmem:[#allocation7 + $0x80] sm:$0xff]
    %v79 = vld [vmem:[#allocation7 + $0x88] sm:$0xff]
    %v80 = vld [vmem:[#allocation7 + $0x90] sm:$0xff]
    %v81 = vld [vmem:[#allocation7 + $0x98] sm:$0xff]
    %v82 = vld [vmem:[#allocation7 + $0xa0] sm:$0xff]
    %v83 = vld [vmem:[#allocation7 + $0xa8] sm:$0xff]
    %v84 = vld [vmem:[#allocation7 + $0xb0] sm:$0xff]
    %v85 = vld [vmem:[#allocation7 + $0xb8] sm:$0xff]
    %v86 = vld [vmem:[#allocation7 + $0xc0] sm:$0xff]
    %v87 = vld [vmem:[#allocation7 + $0xc8] sm:$0xff]
    %v88 = vld [vmem:[#allocation7 + $0xd0] sm:$0xff]
    %v89 = vld [vmem:[#allocation7 + $0xd8] sm:$0xff]
    %v90 = vld [vmem:[#allocation7 + $0xe0] sm:$0xff]
    %v91 = vld [vmem:[#allocation7 + $0xe8] sm:$0xff]
    %v92 = vld [vmem:[#allocation7 + $0xf0] sm:$0xff]
    %v93 = vld [vmem:[#allocation7 + $0xf8] sm:$0xff]
    %v94 = vld [vmem:[#allocation2] sm:$0xff]
    %v95 = vld [vmem:[#allocation2 + $0x8] sm:$0xff]
    %v96 = vld [vmem:[#allocation5] sm:$0xff]
    %v97 = vld [vmem:[#allocation5 + $0x8] sm:$0xff]
    %v98 = vld [vmem:[#allocation5 + $0x10] sm:$0xff]
    %v99 = vld [vmem:[#allocation5 + $0x18] sm:$0xff]
    %v100 = vld [vmem:[#allocation5 + $0x20] sm:$0xff]
    %v101 = vld [vmem:[#allocation5 + $0x28] sm:$0xff]
    %v102 = vld [vmem:[#allocation5 + $0x30] sm:$0xff]
    %v103 = vld [vmem:[#allocation5 + $0x38] sm:$0xff]
    %v104 = vld [vmem:[#allocation5 + $0x40] sm:$0xff]
    %v105 = vld [vmem:[#allocation5 + $0x48] sm:$0xff]
    %v106 = vld [vmem:[#allocation5 + $0x50] sm:$0xff]
    %v107 = vld [vmem:[#allocation5 + $0x58] sm:$0xff]
    %v108 = vld [vmem:[#allocation5 + $0x60] sm:$0xff]
    %v109 = vld [vmem:[#allocation5 + $0x68] sm:$0xff]
    %v110 = vld [vmem:[#allocation5 + $0x70] sm:$0xff]
    %v111 = vld [vmem:[#allocation5 + $0x78] sm:$0xff]
    %v112 = vld [vmem:[#allocation5 + $0x80] sm:$0xff]
    %v113 = vld [vmem:[#allocation5 + $0x88] sm:$0xff]
    %v114 = vld [vmem:[#allocation5 + $0x90] sm:$0xff]
    %v115 = vld [vmem:[#allocation5 + $0x98] sm:$0xff]
    %v116 = vld [vmem:[#allocation5 + $0xa0] sm:$0xff]
    %v117 = vld [vmem:[#allocation5 + $0xa8] sm:$0xff]
    %v118 = vld [vmem:[#allocation5 + $0xb0] sm:$0xff]
    %v119 = vld [vmem:[#allocation5 + $0xb8] sm:$0xff]
    %v120 = vld [vmem:[#allocation5 + $0xc0] sm:$0xff]
    %v121 = vld [vmem:[#allocation5 + $0xc8] sm:$0xff]
    %v122 = vld [vmem:[#allocation5 + $0xd0] sm:$0xff]
    %v123 = vld [vmem:[#allocation5 + $0xd8] sm:$0xff]
    %v124 = vld [vmem:[#allocation5 + $0xe0] sm:$0xff]
    %v125 = vld [vmem:[#allocation5 + $0xe8] sm:$0xff]
    %v126 = vld [vmem:[#allocation5 + $0xf0] sm:$0xff]
    %v127 = vld [vmem:[#allocation5 + $0xf8] sm:$0xff]
    %v128 = vld [vmem:[%s2] sm:$0x3]
    %v130 = vlaneseq
    %v131 = vshrl.u32 %v130, 7
    %v132 = vsub.s32 0, %v131
    %v133 = vrot.slane %v128, %v132
    %v134 = vlaneseq
    %v135 = vshrl.u32 %v134, 7
    %v136 = vsub.s32 1, %v135
    %v137 = vrot.slane %v128, %v136
    %140 = vmatprep.subr.mxu0 %v97
    %141 = vmatpush1.msra.mxu0 %v96
    %142 = vmatprep.subr.mxu0 %v99
    %143 = vmatpush1.msra.mxu0 %v98
    %144 = vmatprep.subr.mxu0 %v101
    %145 = vmatpush1.msra.mxu0 %v100
    %146 = vmatprep.subr.mxu0 %v103
    %147 = vmatpush1.msra.mxu0 %v102
    %148 = vmatprep.subr.mxu0 %v105
    %149 = vmatpush1.msra.mxu0 %v104
    %150 = vmatprep.subr.mxu0 %v107
    %151 = vmatpush1.msra.mxu0 %v106
    %152 = vmatprep.subr.mxu0 %v109
    %153 = vmatpush1.msra.mxu0 %v108
    %154 = vmatprep.subr.mxu0 %v111
    %155 = vmatpush1.msra.mxu0 %v110
    %156 = vmatprep.subr.mxu0 %v113
    %157 = vmatpush1.msra.mxu0 %v112
    %158 = vmatprep.subr.mxu0 %v115
    %159 = vmatpush1.msra.mxu0 %v114
    %160 = vmatprep.subr.mxu0 %v117
    %161 = vmatpush1.msra.mxu0 %v116
    %162 = vmatprep.subr.mxu0 %v119
    %163 = vmatpush1.msra.mxu0 %v118
    %164 = vmatprep.subr.mxu0 %v121
    %165 = vmatpush1.msra.mxu0 %v120
    %166 = vmatprep.subr.mxu0 %v123
    %167 = vmatpush1.msra.mxu0 %v122
    %168 = vmatprep.subr.mxu0 %v125
    %169 = vmatpush1.msra.mxu0 %v124
    %170 = vmatprep.subr.mxu0 %v127
    %171 = vmatpush1.msra.mxu0 %v126
    %172 = vmatprep.subr.mxu0 0.0
    %173 = vmatpush1.msra.mxu0 0.0
    %174 = vmatprep.subr.mxu0 0.0
    %175 = vmatpush1.msra.mxu0 0.0
    %176 = vmatprep.subr.mxu0 0.0
    %177 = vmatpush1.msra.mxu0 0.0
    %178 = vmatprep.subr.mxu0 0.0
    %179 = vmatpush1.msra.mxu0 0.0
    %180 = vmatprep.subr.mxu0 0.0
    %181 = vmatpush1.msra.mxu0 0.0
    %182 = vmatprep.subr.mxu0 0.0
    %183 = vmatpush1.msra.mxu0 0.0
    %184 = vmatprep.subr.mxu0 0.0
    %185 = vmatpush1.msra.mxu0 0.0
    %186 = vmatprep.subr.mxu0 0.0
    %187 = vmatpush1.msra.mxu0 0.0
    %188 = vmatprep.subr.mxu0 0.0
    %189 = vmatpush1.msra.mxu0 0.0
    %190 = vmatprep.subr.mxu0 0.0
    %191 = vmatpush1.msra.mxu0 0.0
    %192 = vmatprep.subr.mxu0 0.0
    %193 = vmatpush1.msra.mxu0 0.0
    %194 = vmatprep.subr.mxu0 0.0
    %195 = vmatpush1.msra.mxu0 0.0
    %196 = vmatprep.subr.mxu0 0.0
    %197 = vmatpush1.msra.mxu0 0.0
    %198 = vmatprep.subr.mxu0 0.0
    %199 = vmatpush1.msra.mxu0 0.0
    %200 = vmatprep.subr.mxu0 0.0
    %201 = vmatpush1.msra.mxu0 0.0
    %202 = vmatprep.subr.mxu0 0.0
    %203 = vmatpush1.msra.mxu0 0.0
    %204 = vmatprep.mubr.f32.mxu0 0.0
    %205 = vmatmul.mubr.f32.gmra.mrb[0].mxu0 %v94
    %v206 = vpop.f32.mrb[0].mxu0
    %v207 = vadd.f32 %v133, %v206
    %v208 = vpop.f32.mrb[0].mxu0
    %v209 = vadd.f32 %v137, %v208
    %210 = vmatprep.mubr.f32.mxu0 0.0
    %211 = vmatmul.mubr.f32.gmra.mrb[0].mxu0 %v95
    %v212 = vpop.f32.mrb[0].mxu0
    %v213 = vadd.f32 %v133, %v212
    %v214 = vpop.f32.mrb[0].mxu0
    %v215 = vadd.f32 %v137, %v214
    %216 = vdwg.mxu0
    %v217 = vmax.f32 %v207, 0.0
    %v218 = vmax.f32 %v209, 0.0
    %v219 = vmax.f32 %v213, 0.0
    %v220 = vmax.f32 %v215, 0.0
    %v221 = vld [vmem:[%s4] sm:$0x1]
    %v223 = vlaneseq
    %v224 = vshrl.u32 %v223, 7
    %v225 = vsub.s32 0, %v224
    %v226 = vrot.slane %v221, %v225
    %228 = vmatprep.subr.mxu0 0.0
    %229 = vmatpush1.msra.mxu0 %v62
    %230 = vmatprep.subr.mxu0 0.0
    %231 = vmatpush1.msra.mxu0 %v63
    %232 = vmatprep.subr.mxu0 0.0
    %233 = vmatpush1.msra.mxu0 %v64
    %234 = vmatprep.subr.mxu0 0.0
    %235 = vmatpush1.msra.mxu0 %v65
    %236 = vmatprep.subr.mxu0 0.0
    %237 = vmatpush1.msra.mxu0 %v66
    %238 = vmatprep.subr.mxu0 0.0
    %239 = vmatpush1.msra.mxu0 %v67
    %240 = vmatprep.subr.mxu0 0.0
    %241 = vmatpush1.msra.mxu0 %v68
    %242 = vmatprep.subr.mxu0 0.0
    %243 = vmatpush1.msra.mxu0 %v69
    %244 = vmatprep.subr.mxu0 0.0
    %245 = vmatpush1.msra.mxu0 %v70
    %246 = vmatprep.subr.mxu0 0.0
    %247 = vmatpush1.msra.mxu0 %v71
    %248 = vmatprep.subr.mxu0 0.0
    %249 = vmatpush1.msra.mxu0 %v72
    %250 = vmatprep.subr.mxu0 0.0
    %251 = vmatpush1.msra.mxu0 %v73
    %252 = vmatprep.subr.mxu0 0.0
    %253 = vmatpush1.msra.mxu0 %v74
    %254 = vmatprep.subr.mxu0 0.0
    %255 = vmatpush1.msra.mxu0 %v75
    %256 = vmatprep.subr.mxu0 0.0
    %257 = vmatpush1.msra.mxu0 %v76
    %258 = vmatprep.subr.mxu0 0.0
    %259 = vmatpush1.msra.mxu0 %v77
    %260 = vmatprep.subr.mxu0 0.0
    %261 = vmatpush1.msra.mxu0 %v78
    %262 = vmatprep.subr.mxu0 0.0
    %263 = vmatpush1.msra.mxu0 %v79
    %264 = vmatprep.subr.mxu0 0.0
    %265 = vmatpush1.msra.mxu0 %v80
    %266 = vmatprep.subr.mxu0 0.0
    %267 = vmatpush1.msra.mxu0 %v81
    %268 = vmatprep.subr.mxu0 0.0
    %269 = vmatpush1.msra.mxu0 %v82
    %270 = vmatprep.subr.mxu0 0.0
    %271 = vmatpush1.msra.mxu0 %v83
    %272 = vmatprep.subr.mxu0 0.0
    %273 = vmatpush1.msra.mxu0 %v84
    %274 = vmatprep.subr.mxu0 0.0
    %275 = vmatpush1.msra.mxu0 %v85
    %276 = vmatprep.subr.mxu0 0.0
    %277 = vmatpush1.msra.mxu0 %v86
    %278 = vmatprep.subr.mxu0 0.0
    %279 = vmatpush1.msra.mxu0 %v87
    %280 = vmatprep.subr.mxu0 0.0
    %281 = vmatpush1.msra.mxu0 %v88
    %282 = vmatprep.subr.mxu0 0.0
    %283 = vmatpush1.msra.mxu0 %v89
    %284 = vmatprep.subr.mxu0 0.0
    %285 = vmatpush1.msra.mxu0 %v90
    %286 = vmatprep.subr.mxu0 0.0
    %287 = vmatpush1.msra.mxu0 %v91
    %288 = vmatprep.subr.mxu0 0.0
    %289 = vmatpush1.msra.mxu0 %v92
    %290 = vmatprep.subr.mxu0 0.0
    %291 = vmatpush1.msra.mxu0 %v93
    %292 = vmatprep.mubr.f32.mxu0 %v218
    %293 = vmatmul.mubr.f32.gmra.mrb[0].mxu0 %v217
    %v294 = vpop.f32.mrb[0].mxu0
    %v295 = vadd.f32 %v226, %v294
    %v296 = vpop.f32.mrb[0].mxu0
    %297 = vmatprep.mubr.f32.mxu0 %v220
    %298 = vmatmul.mubr.f32.gmra.mrb[0].mxu0 %v219
    %v299 = vpop.f32.mrb[0].mxu0
    %v300 = vadd.f32 %v226, %v299
    %v301 = vpop.f32.mrb[0].mxu0
    %302 = vdwg.mxu0
    %303 = vst [vmem:[#allocation8] sm:$0xff] %v295
    %304 = vst [vmem:[#allocation8 + $0x8] sm:$0xff] %v300
    // Predicated region
    $region34: #{tpu_custom_call.1} parent=1 // pred_check
      _
    $region35: #{tpu_custom_call.1} parent=1 // pred_check_branch
      %306 = sbr.rel (0) target = $region37
    $region36: #{tpu_custom_call.1} parent=1 // pred_region
      %s308 = ssub.s32 256, 256
      %309 = vsyncadd [#allocation4], %s308
      %s310 = sshll.u32 [#allocation8], 4
      %s311 = int_to_ptr.vmem [resolvable:$true] %s310
      %316 = dma.vmem_to_hbm [thread:$0]  %s311, 256, %s5, [#allocation4], 128, 128, 8
    $region37: #{tpu_custom_call.1} parent=1 // pred_fallthru
      _
    // Predicated region
    $region38: #{tpu_custom_call.1} parent=1 // pred_check
      _
    $region39: #{tpu_custom_call.1} parent=1 // pred_check_branch
      %318 = sbr.rel (0) target = $region41
    $region40: #{tpu_custom_call.1} parent=1 // pred_region
      %319 = dma.done [#allocation4], 256
    $region41: #{tpu_custom_call.1} parent=1 // pred_fallthru
      _
    %320 = vsyncpa [#allocation3], 1
    %321 = vsyncpa [#allocation6], 1
    %322 = vsyncpa [#allocation4], 1

</llo_original>
